<compile_context>
chip_gen: v5e
topology: v5e:2x2
jax: 0.10.0
libtpu: 0.0.40
codegen_flags: <defaults>
</compile_context>

<pallas_src>
import jax
import jax.numpy as jnp
from jax.experimental import pallas as pl
from jax.experimental.pallas import tpu as pltpu


def linear_small_kernel(params_ref, xt_ref, ot_ref):
    """ot = W @ xt + b with the tiny K contraction unrolled on the VPU.

    params_ref: SMEM f32[K*N + N] — W^T flattened row-major (k-major over
                (K, N)) followed by the bias, i.e. [w(k=0,n=0), ..., b(n=0), ...].
    xt_ref:     VMEM (K, B) f32 — x transposed (batch on the lane axis).
    ot_ref:     VMEM (N, B) f32 — output transposed (batch on the lane axis).
    """
    xt = xt_ref[...]
    K, B = xt.shape
    N = ot_ref.shape[0]

    for n in range(N):
        # Accumulator initialized with the (broadcast) bias — no trailing add.
        acc = jnp.full((1, B), params_ref[K * N + n], jnp.float32)
        for k in range(K):
            acc = acc + params_ref[k * N + n] * xt[k:k + 1, :]
        ot_ref[n:n + 1, :] = acc


def init_linear_params(weight, bias):
    """One-time parameter formatting (hoisted out of the forward path).

    weight: (N, K) f32 in PyTorch nn.Linear layout.
    bias:   (N,)   f32.
    Returns a single flat f32[K*N + N] array: W^T (row-major over (K, N))
    followed by the bias — matching the indexing in linear_small_kernel.
    """
    wt_flat = jnp.asarray(weight, jnp.float32).T.reshape(-1)  # (K*N,)
    b_flat = jnp.asarray(bias, jnp.float32).reshape(-1)       # (N,)
    return jnp.concatenate([wt_flat, b_flat])                 # (K*N + N,)


def _make_linear_call(B, K, N):
    cost = pl.CostEstimate(
        flops=2 * B * K * N,
        transcendentals=0,
        bytes_accessed=4 * (B * K + K * N + N + B * N),
    )
    vmem = pltpu.MemorySpace.VMEM
    smem = pltpu.MemorySpace.SMEM
    return pl.pallas_call(
        linear_small_kernel,
        out_shape=jax.ShapeDtypeStruct((N, B), jnp.float32),
        in_specs=[
            pl.BlockSpec(memory_space=smem),                       # params
            pl.BlockSpec((K, B), lambda: (0, 0), memory_space=vmem),  # x^T
        ],
        out_specs=pl.BlockSpec((N, B), lambda: (0, 0), memory_space=vmem),
        cost_estimate=cost,
    )


@jax.jit
def linear_pallas(x, params):
    """x: (B, K) f32, params: f32[K*N + N] -> (B, N) f32."""
    B, K = x.shape
    N = (params.shape[0]) // (K + 1)

    xt = x.T                                   # (K, B): batch on the lane axis
    out_t = _make_linear_call(B, K, N)(params, xt)  # (N, B)
    return out_t.T                             # (B, N)


if __name__ == "__main__":
    key = jax.random.PRNGKey(0)
    k_x, k_w, k_b = jax.random.split(key, 3)

    B, IN_FEATURES, OUT_FEATURES = 4, 2, 1

    # Deterministic "parameters" mimicking nn.Linear(2, 1) init bounds
    # (uniform in [-1/sqrt(in_features), +1/sqrt(in_features)]).
    bound = 1.0 / (IN_FEATURES ** 0.5)
    weight = jax.random.uniform(
        k_w, (OUT_FEATURES, IN_FEATURES), jnp.float32, -bound, bound
    )
    bias = jax.random.uniform(k_b, (OUT_FEATURES,), jnp.float32, -bound, bound)

    x = jax.random.normal(k_x, (B, IN_FEATURES), jnp.float32)

    # One-time parameter formatting (constant work hoisted out of the forward).
    params = jax.block_until_ready(init_linear_params(weight, bias))

    out = linear_pallas(x, params)
    out = jax.block_until_ready(out)

    # Sanity check against plain-JAX reference.
    ref = x @ weight.T + bias
    assert out.shape == (B, OUT_FEATURES)
    assert jnp.allclose(out, ref, atol=1e-5, rtol=1e-5)

    print("KERNEL_OK")
</pallas_src>

<mosaic_0001>
module attributes {stable_mosaic.version = 11 : i64} {
  func.func @linear_small_kernel(%arg0: memref<3xf32, #tpu.memory_space<smem>>, %arg1: memref<2x4xf32, #tpu.memory_space<vmem>>, %arg2: memref<1x4xf32, #tpu.memory_space<vmem>>) attributes {dimension_semantics = [], scalar_prefetch = 0 : i64, scratch_operands = 0 : i64, tpu.core_type = #tpu.core_type<tc>} {
    %c0 = arith.constant 0 : index
    %c0_0 = arith.constant 0 : index
    %0 = vector.load %arg1[%c0, %c0_0] : memref<2x4xf32, #tpu.memory_space<vmem>>, vector<2x4xf32>
    %c2 = arith.constant 2 : index
    %1 = memref.load %arg0[%c2] : memref<3xf32, #tpu.memory_space<smem>>
    %2 = vector.broadcast %1 : f32 to vector<1x4xf32>
    %c0_1 = arith.constant 0 : index
    %3 = memref.load %arg0[%c0_1] : memref<3xf32, #tpu.memory_space<smem>>
    %4 = vector.extract_strided_slice %0 {offsets = [0, 0], sizes = [1, 4], strides = [1, 1]} : vector<2x4xf32> to vector<1x4xf32>
    %5 = vector.broadcast %3 : f32 to vector<1x4xf32>
    %6 = arith.mulf %5, %4 : vector<1x4xf32>
    %7 = arith.addf %2, %6 : vector<1x4xf32>
    %c1 = arith.constant 1 : index
    %8 = memref.load %arg0[%c1] : memref<3xf32, #tpu.memory_space<smem>>
    %9 = vector.extract_strided_slice %0 {offsets = [1, 0], sizes = [1, 4], strides = [1, 1]} : vector<2x4xf32> to vector<1x4xf32>
    %10 = vector.broadcast %8 : f32 to vector<1x4xf32>
    %11 = arith.mulf %10, %9 : vector<1x4xf32>
    %12 = arith.addf %7, %11 : vector<1x4xf32>
    %c0_2 = arith.constant 0 : index
    %c0_3 = arith.constant 0 : index
    %13 = vector.load %arg2[%c0_2, %c0_3] : memref<1x4xf32, #tpu.memory_space<vmem>>, vector<1x4xf32>
    tpu.vector_store %arg2[%c0_2, %c0_3], %12 {strides = array<i32>} : memref<1x4xf32, #tpu.memory_space<vmem>>, vector<1x4xf32>,
    return
  }
}

</mosaic_0001>

<llo_original>
// kernel: linear_pallas.1
$region0: #{linear_pallas.1}
  #allocation0 [shape = 'u32[]', space=smem, size = 0x4, offset = 0x4, fixed_abs, tag = 'smem constant byte address 0x4 - core index']
  #allocation1 [shape = 'u32[72,128]{1,0:T(1,128)}', space=vmem, size = 0x9000, scoped, tag = 'internal scratch']
  %s0 = inlined_call_operand.vmem [shape: f32[3], index: 0, kind: input, shape index: {}]
  %s1 = inlined_call_operand.hbm [shape: f32[2,4], index: 1, kind: input, shape index: {}]
  %s2 = inlined_call_operand.hbm [shape: f32[1,4], index: 2, kind: output, shape index: {}]
  %s3 = sld [smem:[#allocation0]]
  $region26: #{linear_pallas.1} parent=0
    _
  %s5 = ssub.s32 1, %s3
  %s6 = scalar_select 0, %s5, %s3
  $region1: #{linear_pallas.1} parent=0
    #allocation2 [shape = 'u8[512]{0}', space=smem, size = 0x200, scoped, tag = 'input window, operand 0, single buffered']
    #allocation3 [shape = 's32[1]{0}', space=sflag, size = 0x4, scoped, tag = 'scoped memory for linear_pallas.1']
    #allocation4 [shape = 's32[1]{0}', space=sflag, size = 0x4, scoped, tag = 'scoped memory for linear_pallas.1']
    #allocation5 [shape = 's32[1]{0}', space=sflag, size = 0x4, scoped, tag = 'scoped memory for linear_pallas.1']
    #allocation6 [shape = 'u8[1024]{0}', space=vmem, size = 0x400, scoped, tag = 'input window, operand 1, single buffered']
    #allocation7 [shape = 'u8[512]{0}', space=vmem, size = 0x400, scoped, tag = 'output window, operand 0, single buffered']
    %7 = vsyncpa [#allocation5], 0
    %8 = vsyncpa [#allocation3], 0
    %9 = vsyncpa [#allocation4], 0
    // Predicated region
    $region2: #{linear_pallas.1} parent=1 // pred_check
      _
    $region3: #{linear_pallas.1} parent=1 // pred_check_branch
      %11 = sbr.rel (0) target = $region5
    $region4: #{linear_pallas.1} parent=1 // pred_region
      %13 = vsyncadd [#allocation5], 0
      %s15 = sshll.u32 %s0, 4
      %s16 = int_to_ptr.vmem [resolvable:$true] %s15
      %18 = dma.vmem_to_smem %s16, 16, [#allocation2], [#allocation5]
    $region5: #{linear_pallas.1} parent=1 // pred_fallthru
      _
    // Predicated region
    $region6: #{linear_pallas.1} parent=1 // pred_check
      _
    $region7: #{linear_pallas.1} parent=1 // pred_check_branch
      %20 = sbr.rel (0) target = $region9
    $region8: #{linear_pallas.1} parent=1 // pred_region
      %22 = vsyncadd [#allocation3], 0
      %s24 = sshll.u32 %s1, 4
      %s25 = int_to_ptr.hbm [resolvable:$true] %s24
      %s26 = sshll.u32 [#allocation6], 4
      %s27 = int_to_ptr.vmem [resolvable:$true] %s26
      %29 = dma.hbm_to_vmem [thread:$0]  %s25, 32, %s27, [#allocation3]
    $region9: #{linear_pallas.1} parent=1 // pred_fallthru
      _
    // Predicated region
    $region10: #{linear_pallas.1} parent=1 // pred_check
      _
    $region11: #{linear_pallas.1} parent=1 // pred_check_branch
      %31 = sbr.rel (0) target = $region13
    $region12: #{linear_pallas.1} parent=1 // pred_region
      %33 = dma.done [#allocation5], 16
    $region13: #{linear_pallas.1} parent=1 // pred_fallthru
      _
    // Predicated region
    $region14: #{linear_pallas.1} parent=1 // pred_check
      _
    $region15: #{linear_pallas.1} parent=1 // pred_check_branch
      %35 = sbr.rel (0) target = $region17
    $region16: #{linear_pallas.1} parent=1 // pred_region
      %37 = dma.done [#allocation3], 32
    $region17: #{linear_pallas.1} parent=1 // pred_fallthru
      _
    %38 = sfence
    %v39 = vld [vmem:[#allocation6] sm:$0x3]
    %s40 = sld [smem:[#allocation2 + $0x2]]
    %v41 = vstv %s40
    %s42 = sld [smem:[#allocation2]]
    %v43 = vstv %s42
    %v44 = vmul.f32 %v43, %v39
    %v45 = vadd.f32 %v41, %v44
    %s46 = sld [smem:[#allocation2 + $0x1]]
    %v47 = vstv %s46
    %v48 = vmul.f32 %v47, %v39
    %v50 = vrot.slane %v48, 1
    %v52 = vadd.f32 %v45, %v50
    %vm53 = vcmask 24576
    %54 = vst.msk [vmem:[#allocation7] sm:$0x1] %vm53, %v52
    // Predicated region
    $region18: #{linear_pallas.1} parent=1 // pred_check
      _
    $region19: #{linear_pallas.1} parent=1 // pred_check_branch
      %56 = sbr.rel (0) target = $region21
    $region20: #{linear_pallas.1} parent=1 // pred_region
      %58 = vsyncadd [#allocation4], 0
      %s60 = sshll.u32 [#allocation7], 4
      %s61 = int_to_ptr.vmem [resolvable:$true] %s60
      %s62 = sshll.u32 %s2, 4
      %s63 = int_to_ptr.hbm [resolvable:$true] %s62
      %65 = dma.vmem_to_hbm [thread:$0]  %s61, 16, %s63, [#allocation4]
    $region21: #{linear_pallas.1} parent=1 // pred_fallthru
      _
    // Predicated region
    $region22: #{linear_pallas.1} parent=1 // pred_check
      _
    $region23: #{linear_pallas.1} parent=1 // pred_check_branch
      %67 = sbr.rel (0) target = $region25
    $region24: #{linear_pallas.1} parent=1 // pred_region
      %69 = dma.done [#allocation4], 16
    $region25: #{linear_pallas.1} parent=1 // pred_fallthru
      _
    %70 = vsyncpa [#allocation3], 1
    %71 = vsyncpa [#allocation4], 1
    %72 = vsyncpa [#allocation5], 1

</llo_original>
